<compile_context>
chip_gen: v5e
topology: v5e:2x2
jax: 0.10.0
libtpu: 0.0.40
codegen_flags: <defaults>
</compile_context>

<pallas_src>
import jax
import jax.numpy as jnp
from jax.experimental import pallas as pl
from jax.experimental.pallas import tpu as pltpu

LANE = 128


def _round_up(x, m):
    return ((x + m - 1) // m) * m


def modal_classifier_kernel(wmean_ref, x_ref, w1_ref, b1_ref, w2_ref, b2_ref,
                            out_ref):
    # wmean_ref: (S,)       f32 in SMEM (Conv1d k=1 weights; bias folded into b1)
    # x_ref:     (S, TB, E) native seq-first layout (no HBM transpose)
    # w1_ref:    (E, Hp)    Linear1 weight, pre-transposed, zero-padded to 128 lanes
    # b1_ref:    (1, Hp)    Linear1 bias + folded Conv1d bias
    # w2_ref:    (Hp, Cp)   Linear2 weight, pre-transposed, zero-padded
    # b2_ref:    (1, Cp)
    # out_ref:   (TB, Cp)   lane-dense output tile (sliced to C outside)
    s_dim = x_ref.shape[0]

    # Conv1d(kernel_size=1, out_channels=1): weighted sum over the spatial axis.
    # Leading-axis indexing + scalar MAC in f32 — no 3-D broadcast, no XLU reduce.
    pooled = x_ref[0].astype(jnp.float32) * wmean_ref[0]
    for s in range(1, s_dim):
        pooled = pooled + x_ref[s].astype(jnp.float32) * wmean_ref[s]

    # Linear1 + tanh (conv bias already folded into b1).
    h = jnp.tanh(
        jnp.dot(pooled, w1_ref[...], preferred_element_type=jnp.float32)
        + b1_ref[...])

    # Linear2 (lane-dense padded output).
    out = jnp.dot(h, w2_ref[...], preferred_element_type=jnp.float32) + b2_ref[...]
    out_ref[...] = out.astype(out_ref.dtype)


def _pick_batch_tile(B, S, E, itemsize):
    # Keep the double-buffered x tile comfortably inside the smallest default
    # scoped VMEM (v5e: 16 MiB; also well under v7x's 64 MiB physical VMEM).
    budget = 8 * 1024 * 1024                      # bytes per x buffer (x2 double-buffered)
    tb = budget // (2 * S * E * itemsize)
    tb = max(8, min(int(tb), 1024))
    tb = (tb // 8) * 8
    return min(tb, _round_up(B, 8))


def modal_classifier_forward(x_seq_first, params, batch_tile=None):
    """x_seq_first: (S, B, E) — the PyTorch input layout. Returns (B, modal_class)."""
    wmean = params["wmean"].astype(jnp.float32)   # (S,)
    bmean = params["bmean"].astype(jnp.float32)   # ()
    w1 = params["w1"].astype(jnp.float32)         # (E, H)   (PyTorch weight transposed)
    b1 = params["b1"].astype(jnp.float32)         # (H,)
    w2 = params["w2"].astype(jnp.float32)         # (H, C)
    b2 = params["b2"].astype(jnp.float32)         # (C,)

    S, B, E = x_seq_first.shape
    H = w1.shape[1]
    C = w2.shape[1]
    Hp = _round_up(max(H, LANE), LANE)
    Cp = _round_up(max(C, LANE), LANE)

    # Fold the Conv1d bias into Linear1's bias:
    #   (pooled + bmean) @ w1 + b1 == pooled @ w1 + (b1 + bmean * sum(w1, axis=0))
    b1_eff = b1 + bmean * jnp.sum(w1, axis=0)

    # Zero-pad to lane-dense widths; padded cols/rows are exactly zero so the
    # final [:, :C] slice is unchanged.
    w1p = jnp.zeros((E, Hp), jnp.float32).at[:, :H].set(w1)
    b1p = jnp.zeros((1, Hp), jnp.float32).at[0, :H].set(b1_eff)
    w2p = jnp.zeros((Hp, Cp), jnp.float32).at[:H, :C].set(w2)
    b2p = jnp.zeros((1, Cp), jnp.float32).at[0, :C].set(b2)

    # Batch tiling (generation-safe tile size, multiple of 8 sublanes).
    tb = batch_tile if batch_tile is not None else _pick_batch_tile(
        B, S, E, x_seq_first.dtype.itemsize)
    tb = max(8, (min(tb, _round_up(B, 8)) // 8) * 8)
    Bp = _round_up(B, tb)
    if Bp != B:
        x_in = jnp.zeros((S, Bp, E), x_seq_first.dtype).at[:, :B, :].set(x_seq_first)
    else:
        x_in = x_seq_first

    grid = (Bp // tb,)

    out = pl.pallas_call(
        modal_classifier_kernel,
        out_shape=jax.ShapeDtypeStruct((Bp, Cp), jnp.float32),
        grid=grid,
        in_specs=[
            pl.BlockSpec(memory_space=pltpu.MemorySpace.SMEM),  # wmean (S,) scalars
            pl.BlockSpec((S, tb, E), lambda i: (0, i, 0)),      # x tile, native layout
            pl.BlockSpec((E, Hp), lambda i: (0, 0)),            # w1
            pl.BlockSpec((1, Hp), lambda i: (0, 0)),            # b1 (+ folded conv bias)
            pl.BlockSpec((Hp, Cp), lambda i: (0, 0)),           # w2
            pl.BlockSpec((1, Cp), lambda i: (0, 0)),            # b2
        ],
        out_specs=pl.BlockSpec((tb, Cp), lambda i: (i, 0)),
        compiler_params=pltpu.CompilerParams(
            dimension_semantics=("parallel",),
        ),
    )(wmean, x_in, w1p, b1p, w2p, b2p)

    return out[:B, :C]


def init_params(key, embed_dim, spatial_part, modal_class):
    hidden = embed_dim // 2
    ks = jax.random.split(key, 6)
    # Conv1d(spatial_part, 1, kernel_size=1): weight (1, S, 1) -> stored as (S,)
    wmean = jax.random.normal(ks[0], (spatial_part,), jnp.float32) * 0.1
    bmean = jax.random.normal(ks[1], (), jnp.float32) * 0.1
    # Linear1: PyTorch weight (H, E) -> stored transposed (E, H)
    w1 = jax.random.normal(ks[2], (embed_dim, hidden), jnp.float32) * 0.1
    b1 = jax.random.normal(ks[3], (hidden,), jnp.float32) * 0.1
    # Linear2: PyTorch weight (C, H) -> stored transposed (H, C)
    w2 = jax.random.normal(ks[4], (hidden, modal_class), jnp.float32) * 0.1
    b2 = jax.random.normal(ks[5], (modal_class,), jnp.float32) * 0.1
    return {"wmean": wmean, "bmean": bmean, "w1": w1, "b1": b1, "w2": w2, "b2": b2}


def reference_forward(x_seq_first, params):
    x = jnp.transpose(x_seq_first, (1, 0, 2))                    # (B, S, E)
    pooled = jnp.einsum("bse,s->be", x, params["wmean"]) + params["bmean"]
    h = jnp.tanh(pooled @ params["w1"] + params["b1"])
    return h @ params["w2"] + params["b2"]


if __name__ == "__main__":
    # TODO(synk): eval-mode forward returns None in the PyTorch module; only the
    # training-path output is implemented here.
    embed_dim, spatial_part, modal_class = 32, 4, 3
    batch = 16

    key = jax.random.PRNGKey(0)
    k_x, k_p = jax.random.split(key)
    # Input in PyTorch-style seq-first layout: (spatial_part, batch, embed_dim)
    x = jax.random.normal(k_x, (spatial_part, batch, embed_dim), jnp.float32)
    params = init_params(k_p, embed_dim, spatial_part, modal_class)

    out = modal_classifier_forward(x, params)
    out = jax.block_until_ready(out)

    ref = reference_forward(x, params)
    assert out.shape == (batch, modal_class)
    assert jnp.allclose(out, ref, atol=1e-5, rtol=1e-5), "mismatch vs reference"

    print("KERNEL_OK")
</pallas_src>

<mosaic_0001>
module attributes {stable_mosaic.version = 11 : i64} {
  func.func @modal_classifier_kernel(%arg0: i32, %arg1: memref<4xf32, #tpu.memory_space<smem>>, %arg2: memref<4x16x32xf32, #tpu.memory_space<vmem>>, %arg3: memref<32x128xf32, #tpu.memory_space<vmem>>, %arg4: memref<1x128xf32, #tpu.memory_space<vmem>>, %arg5: memref<128x128xf32, #tpu.memory_space<vmem>>, %arg6: memref<1x128xf32, #tpu.memory_space<vmem>>, %arg7: memref<16x128xf32, #tpu.memory_space<vmem>>) attributes {dimension_semantics = [#tpu.dimension_semantics<parallel>], iteration_bounds = array<i64: 1>, scalar_prefetch = 0 : i64, scratch_operands = 0 : i64, tpu.core_type = #tpu.core_type<tc>, window_params = [{transform_indices = @transform_0, window_bounds = array<i64: 4>}, {transform_indices = @transform_1, window_bounds = array<i64: 4, 16, 32>}, {pipeline_mode = #tpu.pipeline_mode<synchronous>, transform_indices = @transform_2, window_bounds = array<i64: 32, 128>}, {pipeline_mode = #tpu.pipeline_mode<synchronous>, transform_indices = @transform_3, window_bounds = array<i64: 1, 128>}, {pipeline_mode = #tpu.pipeline_mode<synchronous>, transform_indices = @transform_4, window_bounds = array<i64: 128, 128>}, {pipeline_mode = #tpu.pipeline_mode<synchronous>, transform_indices = @transform_5, window_bounds = array<i64: 1, 128>}, {transform_indices = @transform_6, window_bounds = array<i64: 16, 128>}]} {
    %c0 = arith.constant 0 : index
    %c0_0 = arith.constant 0 : index
    %c0_1 = arith.constant 0 : index
    %0 = vector.load %arg2[%c0, %c0_0, %c0_1] : memref<4x16x32xf32, #tpu.memory_space<vmem>>, vector<1x16x32xf32>
    %1 = vector.shape_cast %0 : vector<1x16x32xf32> to vector<16x32xf32>
    %c0_2 = arith.constant 0 : index
    %2 = memref.load %arg1[%c0_2] : memref<4xf32, #tpu.memory_space<smem>>
    %3 = vector.broadcast %2 : f32 to vector<16x32xf32>
    %4 = arith.mulf %1, %3 : vector<16x32xf32>
    %c1 = arith.constant 1 : index
    %c0_3 = arith.constant 0 : index
    %c0_4 = arith.constant 0 : index
    %5 = vector.load %arg2[%c1, %c0_3, %c0_4] : memref<4x16x32xf32, #tpu.memory_space<vmem>>, vector<1x16x32xf32>
    %6 = vector.shape_cast %5 : vector<1x16x32xf32> to vector<16x32xf32>
    %c1_5 = arith.constant 1 : index
    %7 = memref.load %arg1[%c1_5] : memref<4xf32, #tpu.memory_space<smem>>
    %8 = vector.broadcast %7 : f32 to vector<16x32xf32>
    %9 = arith.mulf %6, %8 : vector<16x32xf32>
    %10 = arith.addf %4, %9 : vector<16x32xf32>
    %c2 = arith.constant 2 : index
    %c0_6 = arith.constant 0 : index
    %c0_7 = arith.constant 0 : index
    %11 = vector.load %arg2[%c2, %c0_6, %c0_7] : memref<4x16x32xf32, #tpu.memory_space<vmem>>, vector<1x16x32xf32>
    %12 = vector.shape_cast %11 : vector<1x16x32xf32> to vector<16x32xf32>
    %c2_8 = arith.constant 2 : index
    %13 = memref.load %arg1[%c2_8] : memref<4xf32, #tpu.memory_space<smem>>
    %14 = vector.broadcast %13 : f32 to vector<16x32xf32>
    %15 = arith.mulf %12, %14 : vector<16x32xf32>
    %16 = arith.addf %10, %15 : vector<16x32xf32>
    %c3 = arith.constant 3 : index
    %c0_9 = arith.constant 0 : index
    %c0_10 = arith.constant 0 : index
    %17 = vector.load %arg2[%c3, %c0_9, %c0_10] : memref<4x16x32xf32, #tpu.memory_space<vmem>>, vector<1x16x32xf32>
    %18 = vector.shape_cast %17 : vector<1x16x32xf32> to vector<16x32xf32>
    %c3_11 = arith.constant 3 : index
    %19 = memref.load %arg1[%c3_11] : memref<4xf32, #tpu.memory_space<smem>>
    %20 = vector.broadcast %19 : f32 to vector<16x32xf32>
    %21 = arith.mulf %18, %20 : vector<16x32xf32>
    %22 = arith.addf %16, %21 : vector<16x32xf32>
    %c0_12 = arith.constant 0 : index
    %c0_13 = arith.constant 0 : index
    %23 = vector.load %arg3[%c0_12, %c0_13] : memref<32x128xf32, #tpu.memory_space<vmem>>, vector<32x128xf32>
    %cst = arith.constant dense<0.000000e+00> : vector<16x128xf32>
    %24 = tpu.matmul %22, %23, %cst {dimension_numbers = #tpu.dot_dimension_numbers<[1], [0], [0], [1], [0, 0, 1, 1], [], []>} : vector<16x32xf32>, vector<32x128xf32>, vector<16x128xf32> -> vector<16x128xf32>
    %c0_14 = arith.constant 0 : index
    %c0_15 = arith.constant 0 : index
    %25 = vector.load %arg4[%c0_14, %c0_15] : memref<1x128xf32, #tpu.memory_space<vmem>>, vector<1x128xf32>
    %26 = vector.broadcast %25 : vector<1x128xf32> to vector<16x128xf32>
    %27 = arith.addf %24, %26 : vector<16x128xf32>
    %28 = math.tanh %27 : vector<16x128xf32>
    %c0_16 = arith.constant 0 : index
    %c0_17 = arith.constant 0 : index
    %29 = vector.load %arg5[%c0_16, %c0_17] : memref<128x128xf32, #tpu.memory_space<vmem>>, vector<128x128xf32>
    %cst_18 = arith.constant dense<0.000000e+00> : vector<16x128xf32>
    %30 = tpu.matmul %28, %29, %cst_18 {dimension_numbers = #tpu.dot_dimension_numbers<[1], [0], [0], [1], [0, 0, 1, 1], [], []>} : vector<16x128xf32>, vector<128x128xf32>, vector<16x128xf32> -> vector<16x128xf32>
    %c0_19 = arith.constant 0 : index
    %c0_20 = arith.constant 0 : index
    %31 = vector.load %arg6[%c0_19, %c0_20] : memref<1x128xf32, #tpu.memory_space<vmem>>, vector<1x128xf32>
    %32 = vector.broadcast %31 : vector<1x128xf32> to vector<16x128xf32>
    %33 = arith.addf %30, %32 : vector<16x128xf32>
    %c0_21 = arith.constant 0 : index
    %c0_22 = arith.constant 0 : index
    %34 = vector.load %arg7[%c0_21, %c0_22] : memref<16x128xf32, #tpu.memory_space<vmem>>, vector<16x128xf32>
    tpu.vector_store %arg7[%c0_21, %c0_22], %33 {strides = array<i32>} : memref<16x128xf32, #tpu.memory_space<vmem>>, vector<16x128xf32>,
    return
  }
  func.func @transform_0(%arg0: i32) -> i32 {
    %c0_i32 = arith.constant 0 : i32
    %c0_i32_0 = arith.constant 0 : i32
    return %c0_i32 : i32
  }
  func.func @transform_1(%arg0: i32) -> (i32, i32, i32) {
    %c0_i32 = arith.constant 0 : i32
    %c0_i32_0 = arith.constant 0 : i32
    %c0_i32_1 = arith.constant 0 : i32
    return %c0_i32, %arg0, %c0_i32_0 : i32, i32, i32
  }
  func.func @transform_2(%arg0: i32) -> (i32, i32) {
    %c0_i32 = arith.constant 0 : i32
    %c0_i32_0 = arith.constant 0 : i32
    %c0_i32_1 = arith.constant 0 : i32
    return %c0_i32, %c0_i32_0 : i32, i32
  }
  func.func @transform_3(%arg0: i32) -> (i32, i32) {
    %c0_i32 = arith.constant 0 : i32
    %c0_i32_0 = arith.constant 0 : i32
    %c0_i32_1 = arith.constant 0 : i32
    return %c0_i32, %c0_i32_0 : i32, i32
  }
  func.func @transform_4(%arg0: i32) -> (i32, i32) {
    %c0_i32 = arith.constant 0 : i32
    %c0_i32_0 = arith.constant 0 : i32
    %c0_i32_1 = arith.constant 0 : i32
    return %c0_i32, %c0_i32_0 : i32, i32
  }
  func.func @transform_5(%arg0: i32) -> (i32, i32) {
    %c0_i32 = arith.constant 0 : i32
    %c0_i32_0 = arith.constant 0 : i32
    %c0_i32_1 = arith.constant 0 : i32
    return %c0_i32, %c0_i32_0 : i32, i32
  }
  func.func @transform_6(%arg0: i32) -> (i32, i32) {
    %c0_i32 = arith.constant 0 : i32
    %c0_i32_0 = arith.constant 0 : i32
    return %arg0, %c0_i32 : i32, i32
  }
}

</mosaic_0001>

<llo_original>
// kernel: tpu_custom_call.1
$region0: #{tpu_custom_call.1}
  #allocation0 [shape = 'u32[]', space=smem, size = 0x4, offset = 0x4, fixed_abs, tag = 'smem constant byte address 0x4 - core index']
  #allocation1 [shape = 'u32[72,128]{1,0:T(1,128)}', space=vmem, size = 0x9000, scoped, tag = 'internal scratch']
  %s0 = inlined_call_operand.hbm [shape: f32[4], index: 0, kind: input, shape index: {}]
  %s1 = inlined_call_operand.hbm [shape: f32[4,16,32], index: 1, kind: input, shape index: {}]
  %s2 = inlined_call_operand.hbm [shape: f32[32,128], index: 2, kind: input, shape index: {}]
  %s3 = inlined_call_operand.vmem [shape: f32[1,128], index: 3, kind: input, shape index: {}]
  %s4 = inlined_call_operand.hbm [shape: f32[128,128], index: 4, kind: input, shape index: {}]
  %s5 = inlined_call_operand.vmem [shape: f32[1,128], index: 5, kind: input, shape index: {}]
  %s6 = inlined_call_operand.hbm [shape: f32[16,128], index: 6, kind: output, shape index: {}]
  %s7 = sld [smem:[#allocation0]]
  $region50: #{tpu_custom_call.1} parent=0
    _
  %s9 = ssub.s32 1, %s7
  %s10 = scalar_select 0, %s9, %s7
  $region1: #{tpu_custom_call.1} parent=0
    #allocation2 [shape = 'u8[512]{0}', space=smem, size = 0x200, scoped, tag = 'input window, operand 0, single buffered']
    #allocation3 [shape = 's32[1]{0}', space=sflag, size = 0x4, scoped, tag = 'scoped memory for tpu_custom_call.1']
    #allocation4 [shape = 's32[1]{0}', space=sflag, size = 0x4, scoped, tag = 'scoped memory for tpu_custom_call.1']
    #allocation5 [shape = 's32[1]{0}', space=sflag, size = 0x4, scoped, tag = 'scoped memory for tpu_custom_call.1']
    #allocation6 [shape = 'u8[32768]{0}', space=vmem, size = 0x8000, scoped, tag = 'input window, operand 1, single buffered']
    #allocation7 [shape = 'u8[16384]{0}', space=vmem, size = 0x4000, scoped, tag = 'input window, operand 2, single buffered']
    #allocation8 [shape = 's32[1]{0}', space=sflag, size = 0x4, scoped, tag = 'scoped memory for tpu_custom_call.1']
    #allocation9 [shape = 'u8[65536]{0}', space=vmem, size = 0x10000, scoped, tag = 'input window, operand 4, single buffered']
    #allocation10 [shape = 'u8[8192]{0}', space=vmem, size = 0x2000, scoped, tag = 'output window, operand 0, single buffered']
    %11 = vsyncpa [#allocation5], 0
    %12 = vsyncpa [#allocation3], 0
    %13 = vsyncpa [#allocation8], 0
    %14 = vsyncpa [#allocation4], 0
    // Predicated region
    $region2: #{tpu_custom_call.1} parent=1 // pred_check
      _
    $region3: #{tpu_custom_call.1} parent=1 // pred_check_branch
      %16 = sbr.rel (0) target = $region5
    $region4: #{tpu_custom_call.1} parent=1 // pred_region
      %18 = vsyncadd [#allocation5], 0
      %s20 = sshll.u32 %s0, 4
      %s21 = int_to_ptr.hbm [resolvable:$true] %s20
      %23 = dma.hbm_to_smem %s21, 16, [#allocation2], [#allocation5]
    $region5: #{tpu_custom_call.1} parent=1 // pred_fallthru
      _
    // Predicated region
    $region6: #{tpu_custom_call.1} parent=1 // pred_check
      _
    $region7: #{tpu_custom_call.1} parent=1 // pred_check_branch
      %25 = sbr.rel (0) target = $region9
    $region8: #{tpu_custom_call.1} parent=1 // pred_region
      %27 = vsyncadd [#allocation3], 0
      %s28 = sshll.u32 %s1, 4
      %s29 = int_to_ptr.hbm [resolvable:$true] %s28
      %s30 = sshll.u32 [#allocation6], 4
      %s31 = int_to_ptr.vmem [resolvable:$true] %s30
      %36 = dma.hbm_to_vmem [thread:$0]  %s29, 1024, %s31, [#allocation3], 128, 128, 8
    $region9: #{tpu_custom_call.1} parent=1 // pred_fallthru
      _
    // Predicated region
    $region10: #{tpu_custom_call.1} parent=1 // pred_check
      _
    $region11: #{tpu_custom_call.1} parent=1 // pred_check_branch
      %38 = sbr.rel (0) target = $region13
    $region12: #{tpu_custom_call.1} parent=1 // pred_region
      %40 = vsyncadd [#allocation8], 0
      %s41 = sshll.u32 %s2, 4
      %s42 = int_to_ptr.hbm [resolvable:$true] %s41
      %s43 = sshll.u32 [#allocation7], 4
      %s44 = int_to_ptr.vmem [resolvable:$true] %s43
      %49 = dma.hbm_to_vmem [thread:$0]  %s42, 512, %s44, [#allocation8], 128, 128, 8
    $region13: #{tpu_custom_call.1} parent=1 // pred_fallthru
      _
    // Predicated region
    $region14: #{tpu_custom_call.1} parent=1 // pred_check
      _
    $region15: #{tpu_custom_call.1} parent=1 // pred_check_branch
      %51 = sbr.rel (0) target = $region17
    $region16: #{tpu_custom_call.1} parent=1 // pred_region
      _
    $region17: #{tpu_custom_call.1} parent=1 // pred_fallthru
      _
    // Predicated region
    $region18: #{tpu_custom_call.1} parent=1 // pred_check
      _
    $region19: #{tpu_custom_call.1} parent=1 // pred_check_branch
      %53 = sbr.rel (0) target = $region21
    $region20: #{tpu_custom_call.1} parent=1 // pred_region
      %55 = vsyncadd [#allocation8], 0
      %s56 = sshll.u32 %s4, 4
      %s57 = int_to_ptr.hbm [resolvable:$true] %s56
      %s58 = sshll.u32 [#allocation9], 4
      %s59 = int_to_ptr.vmem [resolvable:$true] %s58
      %64 = dma.hbm_to_vmem [thread:$0]  %s57, 2048, %s59, [#allocation8], 128, 128, 8
    $region21: #{tpu_custom_call.1} parent=1 // pred_fallthru
      _
    // Predicated region
    $region22: #{tpu_custom_call.1} parent=1 // pred_check
      _
    $region23: #{tpu_custom_call.1} parent=1 // pred_check_branch
      %66 = sbr.rel (0) target = $region25
    $region24: #{tpu_custom_call.1} parent=1 // pred_region
      _
    $region25: #{tpu_custom_call.1} parent=1 // pred_fallthru
      _
    // Predicated region
    $region26: #{tpu_custom_call.1} parent=1 // pred_check
      _
    $region27: #{tpu_custom_call.1} parent=1 // pred_check_branch
      %68 = sbr.rel (0) target = $region29
    $region28: #{tpu_custom_call.1} parent=1 // pred_region
      %70 = dma.done [#allocation5], 16
    $region29: #{tpu_custom_call.1} parent=1 // pred_fallthru
      _
    // Predicated region
    $region30: #{tpu_custom_call.1} parent=1 // pred_check
      _
    $region31: #{tpu_custom_call.1} parent=1 // pred_check_branch
      %72 = sbr.rel (0) target = $region33
    $region32: #{tpu_custom_call.1} parent=1 // pred_region
      %74 = dma.done [#allocation3], 1024
    $region33: #{tpu_custom_call.1} parent=1 // pred_fallthru
      _
    // Predicated region
    $region34: #{tpu_custom_call.1} parent=1 // pred_check
      _
    $region35: #{tpu_custom_call.1} parent=1 // pred_check_branch
      %76 = sbr.rel (0) target = $region37
    $region36: #{tpu_custom_call.1} parent=1 // pred_region
      %78 = dma.done [#allocation8], 512
    $region37: #{tpu_custom_call.1} parent=1 // pred_fallthru
      _
    // Predicated region
    $region38: #{tpu_custom_call.1} parent=1 // pred_check
      _
    $region39: #{tpu_custom_call.1} parent=1 // pred_check_branch
      %80 = sbr.rel (0) target = $region41
    $region40: #{tpu_custom_call.1} parent=1 // pred_region
      %82 = dma.done [#allocation8], 2048
    $region41: #{tpu_custom_call.1} parent=1 // pred_fallthru
      _
    %83 = sfence
    %v84 = vld [vmem:[#allocation6] sm:$0xff]
    %v85 = vld [vmem:[#allocation6 + $0x8] sm:$0xff]
    %s86 = sld [smem:[#allocation2]]
    %v87 = vstv %s86
    %v88 = vmul.f32 %v84, %v87
    %v89 = vmul.f32 %v85, %v87
    %s90 = scalar_lea.vmem [#allocation6], 16
    %v91 = vld [vmem:[%s90] sm:$0xff]
    %v92 = vld [vmem:[%s90 + $0x8] sm:$0xff]
    %s93 = sld [smem:[#allocation2 + $0x1]]
    %v94 = vstv %s93
    %v95 = vmul.f32 %v91, %v94
    %v96 = vmul.f32 %v92, %v94
    %v97 = vadd.f32 %v88, %v95
    %v98 = vadd.f32 %v89, %v96
    %s99 = scalar_lea.vmem [#allocation6], 32
    %v100 = vld [vmem:[%s99] sm:$0xff]
    %v101 = vld [vmem:[%s99 + $0x8] sm:$0xff]
    %s102 = sld [smem:[#allocation2 + $0x2]]
    %v103 = vstv %s102
    %v104 = vmul.f32 %v100, %v103
    %v105 = vmul.f32 %v101, %v103
    %v106 = vadd.f32 %v97, %v104
    %v107 = vadd.f32 %v98, %v105
    %s108 = scalar_lea.vmem [#allocation6], 48
    %v109 = vld [vmem:[%s108] sm:$0xff]
    %v110 = vld [vmem:[%s108 + $0x8] sm:$0xff]
    %s111 = sld [smem:[#allocation2 + $0x3]]
    %v112 = vstv %s111
    %v113 = vmul.f32 %v109, %v112
    %v114 = vmul.f32 %v110, %v112
    %v115 = vadd.f32 %v106, %v113
    %v116 = vadd.f32 %v107, %v114
    %v117 = vld [vmem:[#allocation7] sm:$0xff]
    %v118 = vld [vmem:[#allocation7 + $0x8] sm:$0xff]
    %v119 = vld [vmem:[#allocation7 + $0x10] sm:$0xff]
    %v120 = vld [vmem:[#allocation7 + $0x18] sm:$0xff]
    %v121 = vld [vmem:[%s3] sm:$0x1]
    %v123 = vperm.slane %v121, 0
    %vm125 = vcmask 261120
    %v127 = vsel %vm125, %v115, 0
    %v130 = vsel %vm125, %v116, 0
    %132 = vmatpush.msra.mxu0 0.0
    %133 = vmatpush.msra.mxu0 0.0
    %134 = vmatpush.msra.mxu0 0.0
    %135 = vmatpush.msra.mxu0 0.0
    %136 = vmatpush.msra.mxu0 0.0
    %137 = vmatpush.msra.mxu0 0.0
    %138 = vmatpush.msra.mxu0 0.0
    %139 = vmatpush.msra.mxu0 0.0
    %140 = vmatpush.msra.mxu0 0.0
    %141 = vmatpush.msra.mxu0 0.0
    %142 = vmatpush.msra.mxu0 0.0
    %143 = vmatpush.msra.mxu0 0.0
    %144 = vmatpush.msra.mxu0 %v120
    %145 = vmatpush.msra.mxu0 %v119
    %146 = vmatpush.msra.mxu0 %v118
    %147 = vmatpush.msra.mxu0 %v117
    %148 = vmatmul.f32.gmra.mxu0 %v127
    %v149 = vpop.f32.mrf.mxu0
    %v150 = vadd.f32 %v123, %v149
    %151 = vmatmul.f32.gmra.mxu0 %v130
    %v152 = vpop.f32.mrf.mxu0
    %v153 = vadd.f32 %v123, %v152
    %154 = vdwg.mxu0
    %v155 = vtanh.pop %v150
    %v156 = vtanh.pop %v153
    %v157 = vld [vmem:[#allocation9] sm:$0xff]
    %v158 = vld [vmem:[#allocation9 + $0x8] sm:$0xff]
    %v159 = vld [vmem:[#allocation9 + $0x10] sm:$0xff]
    %v160 = vld [vmem:[#allocation9 + $0x18] sm:$0xff]
    %v161 = vld [vmem:[#allocation9 + $0x20] sm:$0xff]
    %v162 = vld [vmem:[#allocation9 + $0x28] sm:$0xff]
    %v163 = vld [vmem:[#allocation9 + $0x30] sm:$0xff]
    %v164 = vld [vmem:[#allocation9 + $0x38] sm:$0xff]
    %v165 = vld [vmem:[#allocation9 + $0x40] sm:$0xff]
    %v166 = vld [vmem:[#allocation9 + $0x48] sm:$0xff]
    %v167 = vld [vmem:[#allocation9 + $0x50] sm:$0xff]
    %v168 = vld [vmem:[#allocation9 + $0x58] sm:$0xff]
    %v169 = vld [vmem:[#allocation9 + $0x60] sm:$0xff]
    %v170 = vld [vmem:[#allocation9 + $0x68] sm:$0xff]
    %v171 = vld [vmem:[#allocation9 + $0x70] sm:$0xff]
    %v172 = vld [vmem:[#allocation9 + $0x78] sm:$0xff]
    %v173 = vld [vmem:[%s5] sm:$0x1]
    %v175 = vperm.slane %v173, 0
    %177 = vmatpush.msra.mxu0 %v172
    %178 = vmatpush.msra.mxu0 %v171
    %179 = vmatpush.msra.mxu0 %v170
    %180 = vmatpush.msra.mxu0 %v169
    %181 = vmatpush.msra.mxu0 %v168
    %182 = vmatpush.msra.mxu0 %v167
    %183 = vmatpush.msra.mxu0 %v166
    %184 = vmatpush.msra.mxu0 %v165
    %185 = vmatpush.msra.mxu0 %v164
    %186 = vmatpush.msra.mxu0 %v163
    %187 = vmatpush.msra.mxu0 %v162
    %188 = vmatpush.msra.mxu0 %v161
    %189 = vmatpush.msra.mxu0 %v160
    %190 = vmatpush.msra.mxu0 %v159
    %191 = vmatpush.msra.mxu0 %v158
    %192 = vmatpush.msra.mxu0 %v157
    %193 = vmatmul.f32.gmra.mxu0 %v155
    %v194 = vpop.f32.mrf.mxu0
    %v195 = vadd.f32 %v175, %v194
    %196 = vmatmul.f32.gmra.mxu0 %v156
    %v197 = vpop.f32.mrf.mxu0
    %v198 = vadd.f32 %v175, %v197
    %199 = vdwg.mxu0
    %200 = vst [vmem:[#allocation10] sm:$0xff] %v195
    %201 = vst [vmem:[#allocation10 + $0x8] sm:$0xff] %v198
    // Predicated region
    $region42: #{tpu_custom_call.1} parent=1 // pred_check
      _
    $region43: #{tpu_custom_call.1} parent=1 // pred_check_branch
      %203 = sbr.rel (0) target = $region45
    $region44: #{tpu_custom_call.1} parent=1 // pred_region
      %205 = vsyncadd [#allocation4], 0
      %s206 = sshll.u32 [#allocation10], 4
      %s207 = int_to_ptr.vmem [resolvable:$true] %s206
      %s208 = sshll.u32 %s6, 4
      %s209 = int_to_ptr.hbm [resolvable:$true] %s208
      %214 = dma.vmem_to_hbm [thread:$0]  %s207, 256, %s209, [#allocation4], 128, 128, 8
    $region45: #{tpu_custom_call.1} parent=1 // pred_fallthru
      _
    // Predicated region
    $region46: #{tpu_custom_call.1} parent=1 // pred_check
      _
    $region47: #{tpu_custom_call.1} parent=1 // pred_check_branch
      %216 = sbr.rel (0) target = $region49
    $region48: #{tpu_custom_call.1} parent=1 // pred_region
      %218 = dma.done [#allocation4], 256
    $region49: #{tpu_custom_call.1} parent=1 // pred_fallthru
      _
    %219 = vsyncpa [#allocation3], 1
    %220 = vsyncpa [#allocation8], 1
    %221 = vsyncpa [#allocation4], 1
    %222 = vsyncpa [#allocation5], 1

</llo_original>
